<compile_context>
chip_gen: v5e
topology: v5e:2x2
jax: 0.10.0
libtpu: 0.0.40
codegen_flags: <defaults>
</compile_context>

<pallas_src>
import numpy as np
import jax
import jax.numpy as jnp
from jax.experimental import pallas as pl
from jax.experimental.pallas import tpu as pltpu


def _logits_probs_kernel(x_ref, w_ref, b_ref, logits_ref, probs_ref):
    # x_ref: [Bt, K]   w_ref: [K, N]   b_ref: [1, N]   outputs: [Bt, N]
    logits = jnp.dot(x_ref[...], w_ref[...],
                     preferred_element_type=jnp.float32) + b_ref[...]
    logits_ref[...] = logits.astype(logits_ref.dtype)
    # Bernoulli(logits=...) -> probs = sigmoid(logits)  (EUP exp + VPU)
    probs_ref[...] = jax.nn.sigmoid(logits).astype(probs_ref.dtype)


def _logits_only_kernel(x_ref, w_ref, b_ref, logits_ref):
    logits = jnp.dot(x_ref[...], w_ref[...],
                     preferred_element_type=jnp.float32) + b_ref[...]
    logits_ref[...] = logits.astype(logits_ref.dtype)


def bernoulli_head(x, weight, bias, *, tile_b=16384, fold=8,
                   want_probs=True, out_dtype=jnp.float32):
    """Returns (logits, probs) of the FixedBernoulli head, or just logits.

    x:      [B, Din]
    weight: [Dout, Din]  (PyTorch nn.Linear layout)
    bias:   [Dout]
    tile_b: batch rows per grid step (sweepable); fold: rows folded into lanes.
    """
    B, Din = x.shape
    Dout, Din2 = weight.shape
    assert Din == Din2

    # Pre-transpose the parameter once outside the hot path -> [Din, Dout].
    # (Under jit with static params these constructions constant-fold.)
    w_t = weight.T.astype(jnp.float32)
    bias_f = bias.astype(jnp.float32)

    use_fold = fold > 1 and B % fold == 0
    if use_fold:
        rows = B // fold
        k, n = fold * Din, fold * Dout
        # Contiguous (row-major) reshape: no data movement.
        x_in = x.reshape(rows, k)
        # Block-diagonal weight: fold copies of W^T on the diagonal.
        w_in = jnp.kron(jnp.eye(fold, dtype=w_t.dtype), w_t)      # [k, n]
        b_in = jnp.tile(bias_f, fold).reshape(1, n)                # [1, n]
    else:
        rows, k, n = B, Din, Dout
        x_in, w_in, b_in = x, w_t, bias_f.reshape(1, Dout)

    # Rows per grid step (folded units); keep a multiple of 8 sublanes.
    tile_rows = tile_b // fold if use_fold else tile_b
    tile_rows = max(8, (tile_rows // 8) * 8)

    kernel = _logits_probs_kernel if want_probs else _logits_only_kernel
    if want_probs:
        out_shape = (jax.ShapeDtypeStruct((rows, n), out_dtype),
                     jax.ShapeDtypeStruct((rows, n), out_dtype))
    else:
        out_shape = jax.ShapeDtypeStruct((rows, n), out_dtype)

    if rows <= tile_rows:
        # Small batch: single un-gridded call, whole arrays resident in VMEM.
        # TODO(synk): at tiny B (e.g. 8) wall time is dominated by the custom
        # call boundary itself; a plain XLA matmul+sigmoid would be fastest.
        vspec = pl.BlockSpec(memory_space=pltpu.MemorySpace.VMEM)
        out_specs = (vspec, vspec) if want_probs else vspec
        out = pl.pallas_call(
            kernel,
            out_shape=out_shape,
            in_specs=[vspec, vspec, vspec],
            out_specs=out_specs,
        )(x_in, w_in, b_in)
    else:
        # Large batch: tile over rows; no pre-pad — cdiv grid, last block may
        # overrun (OOB reads discarded, OOB writes masked by Pallas).
        nb = pl.cdiv(rows, tile_rows)
        out_row_spec = pl.BlockSpec((tile_rows, n), lambda i: (i, 0))
        out_specs = (out_row_spec, out_row_spec) if want_probs else out_row_spec
        out = pl.pallas_call(
            kernel,
            out_shape=out_shape,
            grid=(nb,),
            in_specs=[
                pl.BlockSpec((tile_rows, k), lambda i: (i, 0)),
                pl.BlockSpec((k, n), lambda i: (0, 0)),   # grid-invariant
                pl.BlockSpec((1, n), lambda i: (0, 0)),   # grid-invariant
            ],
            out_specs=out_specs,
            compiler_params=pltpu.CompilerParams(
                dimension_semantics=("parallel",),
            ),
        )(x_in, w_in, b_in)

    if want_probs:
        logits, probs = out
    else:
        logits, probs = out, None

    if use_fold:
        # Contiguous reshape back to [B, Dout]: no data movement.
        logits = logits.reshape(B, Dout)
        if probs is not None:
            probs = probs.reshape(B, Dout)

    if want_probs:
        return logits, probs
    return logits


def orthogonal_init(key, shape, gain):
    """Deterministic orthogonal init (matches nn.init.orthogonal_ semantics)."""
    rows, cols = shape
    flat = jax.random.normal(key, (max(rows, cols), min(rows, cols)), jnp.float32)
    q, r = jnp.linalg.qr(flat)
    d = jnp.sign(jnp.diag(r))
    q = q * d[None, :]
    if rows < cols:
        q = q.T
    return gain * q[:rows, :cols]


if __name__ == "__main__":
    # Shapes consistent with the module: num_inputs=32, num_outputs=16.
    B, NUM_INPUTS, NUM_OUTPUTS = 8, 32, 16
    GAIN = 0.01

    key = jax.random.PRNGKey(0)
    kx, kw, kx2, kx3 = jax.random.split(key, 4)

    x = jax.random.normal(kx, (B, NUM_INPUTS), jnp.float32)
    weight = orthogonal_init(kw, (NUM_OUTPUTS, NUM_INPUTS), GAIN)  # [Dout, Din]
    bias = jnp.zeros((NUM_OUTPUTS,), jnp.float32)                  # constant 0 init

    def ref(xv):
        l = xv @ weight.T + bias
        return l, jax.nn.sigmoid(l)

    # --- 1. tiny batch: folded, un-gridded path ---
    logits, probs = bernoulli_head(x, weight, bias)
    jax.block_until_ready((logits, probs))
    rl, rp = ref(x)
    np.testing.assert_allclose(np.asarray(logits), np.asarray(rl), rtol=1e-5, atol=1e-5)
    np.testing.assert_allclose(np.asarray(probs), np.asarray(rp), rtol=1e-5, atol=1e-5)

    # --- 1b. logits-only output (reduced writeback) ---
    logits_only = bernoulli_head(x, weight, bias, want_probs=False)
    jax.block_until_ready(logits_only)
    np.testing.assert_allclose(np.asarray(logits_only), np.asarray(rl),
                               rtol=1e-5, atol=1e-5)

    # --- 2. larger batch (divisible by fold): gridded folded path, ragged last block ---
    B2 = 5128  # 641 folded rows; tile_b=2048 -> 256-row blocks -> grid=3, last block ragged
    x2 = jax.random.normal(kx2, (B2, NUM_INPUTS), jnp.float32)
    l2, p2 = bernoulli_head(x2, weight, bias, tile_b=2048)
    jax.block_until_ready((l2, p2))
    rl2, rp2 = ref(x2)
    np.testing.assert_allclose(np.asarray(l2), np.asarray(rl2), rtol=1e-5, atol=1e-5)
    np.testing.assert_allclose(np.asarray(p2), np.asarray(rp2), rtol=1e-5, atol=1e-5)

    # --- 3. batch not divisible by fold: unfolded fallback, gridded, no pre-pad ---
    B3 = 1030
    x3 = jax.random.normal(kx3, (B3, NUM_INPUTS), jnp.float32)
    l3, p3 = bernoulli_head(x3, weight, bias, tile_b=512)
    jax.block_until_ready((l3, p3))
    rl3, rp3 = ref(x3)
    np.testing.assert_allclose(np.asarray(l3), np.asarray(rl3), rtol=1e-5, atol=1e-5)
    np.testing.assert_allclose(np.asarray(p3), np.asarray(rp3), rtol=1e-5, atol=1e-5)

    # TODO(synk): FixedBernoulli's sampling / log_probs / entropy / mode are
    # distribution-object behavior, not part of the forward hot path; the kernel
    # emits logits (and probs) which fully parameterize that distribution.
    print("KERNEL_OK")
</pallas_src>

<mosaic_0001>
module attributes {stable_mosaic.version = 11 : i64} {
  func.func @_logits_probs_kernel(%arg0: memref<1x256xf32, #tpu.memory_space<vmem>>, %arg1: memref<256x128xf32, #tpu.memory_space<vmem>>, %arg2: memref<1x128xf32, #tpu.memory_space<vmem>>, %arg3: memref<1x128xf32, #tpu.memory_space<vmem>>, %arg4: memref<1x128xf32, #tpu.memory_space<vmem>>) attributes {dimension_semantics = [], scalar_prefetch = 0 : i64, scratch_operands = 0 : i64, tpu.core_type = #tpu.core_type<tc>} {
    %c0 = arith.constant 0 : index
    %c0_0 = arith.constant 0 : index
    %0 = vector.load %arg0[%c0, %c0_0] : memref<1x256xf32, #tpu.memory_space<vmem>>, vector<1x256xf32>
    %c0_1 = arith.constant 0 : index
    %c0_2 = arith.constant 0 : index
    %1 = vector.load %arg1[%c0_1, %c0_2] : memref<256x128xf32, #tpu.memory_space<vmem>>, vector<256x128xf32>
    %cst = arith.constant dense<0.000000e+00> : vector<1x128xf32>
    %2 = tpu.matmul %0, %1, %cst {dimension_numbers = #tpu.dot_dimension_numbers<[1], [0], [0], [1], [0, 0, 1, 1], [], []>} : vector<1x256xf32>, vector<256x128xf32>, vector<1x128xf32> -> vector<1x128xf32>
    %c0_3 = arith.constant 0 : index
    %c0_4 = arith.constant 0 : index
    %3 = vector.load %arg2[%c0_3, %c0_4] : memref<1x128xf32, #tpu.memory_space<vmem>>, vector<1x128xf32>
    %4 = arith.addf %2, %3 : vector<1x128xf32>
    %c0_5 = arith.constant 0 : index
    %c0_6 = arith.constant 0 : index
    %5 = vector.load %arg3[%c0_5, %c0_6] : memref<1x128xf32, #tpu.memory_space<vmem>>, vector<1x128xf32>
    tpu.vector_store %arg3[%c0_5, %c0_6], %4 {strides = array<i32>} : memref<1x128xf32, #tpu.memory_space<vmem>>, vector<1x128xf32>,
    %6 = arith.negf %4 : vector<1x128xf32>
    %7 = math.exp %6 : vector<1x128xf32>
    %cst_7 = arith.constant 1.000000e+00 : f32
    %8 = vector.broadcast %cst_7 : f32 to vector<1x128xf32>
    %9 = arith.addf %8, %7 : vector<1x128xf32>
    %10 = arith.divf %8, %9 : vector<1x128xf32>
    %c0_8 = arith.constant 0 : index
    %c0_9 = arith.constant 0 : index
    %11 = vector.load %arg4[%c0_8, %c0_9] : memref<1x128xf32, #tpu.memory_space<vmem>>, vector<1x128xf32>
    tpu.vector_store %arg4[%c0_8, %c0_9], %10 {strides = array<i32>} : memref<1x128xf32, #tpu.memory_space<vmem>>, vector<1x128xf32>,
    return
  }
}

</mosaic_0001>

<llo_original>
// kernel: tpu_custom_call.1
$region0: #{tpu_custom_call.1}
  #allocation0 [shape = 'u32[]', space=smem, size = 0x4, offset = 0x4, fixed_abs, tag = 'smem constant byte address 0x4 - core index']
  #allocation1 [shape = 'u32[72,128]{1,0:T(1,128)}', space=vmem, size = 0x9000, scoped, tag = 'internal scratch']
  %s0 = inlined_call_operand.hbm [shape: f32[1,256], index: 0, kind: input, shape index: {}]
  %s1 = inlined_call_operand.hbm [shape: f32[256,128], index: 1, kind: input, shape index: {}]
  %s2 = inlined_call_operand.vmem [shape: f32[1,128], index: 2, kind: input, shape index: {}]
  %s3 = inlined_call_operand.hbm [shape: f32[1,128], index: 3, kind: output, shape index: {0}]
  %s4 = inlined_call_operand.hbm [shape: f32[1,128], index: 4, kind: output, shape index: {1}]
  %5 = xla_tuple %s3, %s4
  %s6 = sld [smem:[#allocation0]]
  $region38: #{tpu_custom_call.1} parent=0
    _
  %s8 = ssub.s32 1, %s6
  %s9 = scalar_select 0, %s8, %s6
  $region1: #{tpu_custom_call.1} parent=0
    #allocation2 [shape = 'u8[1024]{0}', space=vmem, size = 0x400, scoped, tag = 'input window, operand 0, single buffered']
    #allocation3 [shape = 's32[1]{0}', space=sflag, size = 0x4, scoped, tag = 'scoped memory for tpu_custom_call.1']
    #allocation4 [shape = 's32[1]{0}', space=sflag, size = 0x4, scoped, tag = 'scoped memory for tpu_custom_call.1']
    #allocation5 [shape = 'u8[131072]{0}', space=vmem, size = 0x20000, scoped, tag = 'input window, operand 1, single buffered']
    #allocation6 [shape = 's32[1]{0}', space=sflag, size = 0x4, scoped, tag = 'scoped memory for tpu_custom_call.1']
    #allocation7 [shape = 'u8[512]{0}', space=vmem, size = 0x400, scoped, tag = 'output window, operand 0, single buffered']
    #allocation8 [shape = 'u8[512]{0}', space=vmem, size = 0x400, scoped, tag = 'output window, operand 1, single buffered']
    #allocation9 [shape = 's32[1]{0}', space=sflag, size = 0x4, scoped, tag = 'scoped memory for tpu_custom_call.1']
    %10 = vsyncpa [#allocation3], 0
    %11 = vsyncpa [#allocation6], 0
    %12 = vsyncpa [#allocation4], 0
    %13 = vsyncpa [#allocation9], 0
    // Predicated region
    $region2: #{tpu_custom_call.1} parent=1 // pred_check
      _
    $region3: #{tpu_custom_call.1} parent=1 // pred_check_branch
      %15 = sbr.rel (0) target = $region5
    $region4: #{tpu_custom_call.1} parent=1 // pred_region
      %17 = vsyncadd [#allocation3], 0
      %s19 = sshll.u32 %s0, 4
      %s20 = int_to_ptr.hbm [resolvable:$true] %s19
      %s21 = sshll.u32 [#allocation2], 4
      %s22 = int_to_ptr.vmem [resolvable:$true] %s21
      %24 = dma.hbm_to_vmem [thread:$0]  %s20, 32, %s22, [#allocation3]
    $region5: #{tpu_custom_call.1} parent=1 // pred_fallthru
      _
    // Predicated region
    $region6: #{tpu_custom_call.1} parent=1 // pred_check
      _
    $region7: #{tpu_custom_call.1} parent=1 // pred_check_branch
      %26 = sbr.rel (0) target = $region9
    $region8: #{tpu_custom_call.1} parent=1 // pred_region
      %28 = vsyncadd [#allocation6], 0
      %s29 = sshll.u32 %s1, 4
      %s30 = int_to_ptr.hbm [resolvable:$true] %s29
      %s31 = sshll.u32 [#allocation5], 4
      %s32 = int_to_ptr.vmem [resolvable:$true] %s31
      %37 = dma.hbm_to_vmem [thread:$0]  %s30, 4096, %s32, [#allocation6], 128, 128, 8
    $region9: #{tpu_custom_call.1} parent=1 // pred_fallthru
      _
    // Predicated region
    $region10: #{tpu_custom_call.1} parent=1 // pred_check
      _
    $region11: #{tpu_custom_call.1} parent=1 // pred_check_branch
      %39 = sbr.rel (0) target = $region13
    $region12: #{tpu_custom_call.1} parent=1 // pred_region
      _
    $region13: #{tpu_custom_call.1} parent=1 // pred_fallthru
      _
    // Predicated region
    $region14: #{tpu_custom_call.1} parent=1 // pred_check
      _
    $region15: #{tpu_custom_call.1} parent=1 // pred_check_branch
      %41 = sbr.rel (0) target = $region17
    $region16: #{tpu_custom_call.1} parent=1 // pred_region
      %43 = dma.done [#allocation3], 32
    $region17: #{tpu_custom_call.1} parent=1 // pred_fallthru
      _
    // Predicated region
    $region18: #{tpu_custom_call.1} parent=1 // pred_check
      _
    $region19: #{tpu_custom_call.1} parent=1 // pred_check_branch
      %45 = sbr.rel (0) target = $region21
    $region20: #{tpu_custom_call.1} parent=1 // pred_region
      %47 = dma.done [#allocation6], 4096
    $region21: #{tpu_custom_call.1} parent=1 // pred_fallthru
      _
    %v48 = vld [vmem:[#allocation2] sm:$0x3]
    %v49 = vld [vmem:[#allocation5] sm:$0xff]
    %v50 = vld [vmem:[#allocation5 + $0x8] sm:$0xff]
    %v51 = vld [vmem:[#allocation5 + $0x10] sm:$0xff]
    %v52 = vld [vmem:[#allocation5 + $0x18] sm:$0xff]
    %v53 = vld [vmem:[#allocation5 + $0x20] sm:$0xff]
    %v54 = vld [vmem:[#allocation5 + $0x28] sm:$0xff]
    %v55 = vld [vmem:[#allocation5 + $0x30] sm:$0xff]
    %v56 = vld [vmem:[#allocation5 + $0x38] sm:$0xff]
    %v57 = vld [vmem:[#allocation5 + $0x40] sm:$0xff]
    %v58 = vld [vmem:[#allocation5 + $0x48] sm:$0xff]
    %v59 = vld [vmem:[#allocation5 + $0x50] sm:$0xff]
    %v60 = vld [vmem:[#allocation5 + $0x58] sm:$0xff]
    %v61 = vld [vmem:[#allocation5 + $0x60] sm:$0xff]
    %v62 = vld [vmem:[#allocation5 + $0x68] sm:$0xff]
    %v63 = vld [vmem:[#allocation5 + $0x70] sm:$0xff]
    %v64 = vld [vmem:[#allocation5 + $0x78] sm:$0xff]
    %v65 = vld [vmem:[#allocation5 + $0x80] sm:$0xff]
    %v66 = vld [vmem:[#allocation5 + $0x88] sm:$0xff]
    %v67 = vld [vmem:[#allocation5 + $0x90] sm:$0xff]
    %v68 = vld [vmem:[#allocation5 + $0x98] sm:$0xff]
    %v69 = vld [vmem:[#allocation5 + $0xa0] sm:$0xff]
    %v70 = vld [vmem:[#allocation5 + $0xa8] sm:$0xff]
    %v71 = vld [vmem:[#allocation5 + $0xb0] sm:$0xff]
    %v72 = vld [vmem:[#allocation5 + $0xb8] sm:$0xff]
    %v73 = vld [vmem:[#allocation5 + $0xc0] sm:$0xff]
    %v74 = vld [vmem:[#allocation5 + $0xc8] sm:$0xff]
    %v75 = vld [vmem:[#allocation5 + $0xd0] sm:$0xff]
    %v76 = vld [vmem:[#allocation5 + $0xd8] sm:$0xff]
    %v77 = vld [vmem:[#allocation5 + $0xe0] sm:$0xff]
    %v78 = vld [vmem:[#allocation5 + $0xe8] sm:$0xff]
    %v79 = vld [vmem:[#allocation5 + $0xf0] sm:$0xff]
    %v80 = vld [vmem:[#allocation5 + $0xf8] sm:$0xff]
    %v81 = vld [vmem:[%s2] sm:$0x1]
    %v83 = vperm.slane %v48, 0
    %v84 = vperm.slane %v48, 1
    %87 = vmatpush.msra.mxu0 %v64
    %88 = vmatpush.msra.mxu0 %v63
    %89 = vmatpush.msra.mxu0 %v62
    %90 = vmatpush.msra.mxu0 %v61
    %91 = vmatpush.msra.mxu0 %v60
    %92 = vmatpush.msra.mxu0 %v59
    %93 = vmatpush.msra.mxu0 %v58
    %94 = vmatpush.msra.mxu0 %v57
    %95 = vmatpush.msra.mxu0 %v56
    %96 = vmatpush.msra.mxu0 %v55
    %97 = vmatpush.msra.mxu0 %v54
    %98 = vmatpush.msra.mxu0 %v53
    %99 = vmatpush.msra.mxu0 %v52
    %100 = vmatpush.msra.mxu0 %v51
    %101 = vmatpush.msra.mxu0 %v50
    %102 = vmatpush.msra.mxu0 %v49
    %103 = vmatmul.f32.gmra.mxu0 %v83
    %v104 = vpop.f32.mrf.mxu0
    %v105 = vadd.f32 %v81, %v104
    %106 = vdwg.mxu0
    %107 = vmatpush.msra.mxu0 %v80
    %108 = vmatpush.msra.mxu0 %v79
    %109 = vmatpush.msra.mxu0 %v78
    %110 = vmatpush.msra.mxu0 %v77
    %111 = vmatpush.msra.mxu0 %v76
    %112 = vmatpush.msra.mxu0 %v75
    %113 = vmatpush.msra.mxu0 %v74
    %114 = vmatpush.msra.mxu0 %v73
    %115 = vmatpush.msra.mxu0 %v72
    %116 = vmatpush.msra.mxu0 %v71
    %117 = vmatpush.msra.mxu0 %v70
    %118 = vmatpush.msra.mxu0 %v69
    %119 = vmatpush.msra.mxu0 %v68
    %120 = vmatpush.msra.mxu0 %v67
    %121 = vmatpush.msra.mxu0 %v66
    %122 = vmatpush.msra.mxu0 %v65
    %123 = vmatmul.f32.gmra.mxu0 %v84
    %v124 = vpop.f32.mrf.mxu0
    %v125 = vadd.f32 %v105, %v124
    %126 = vdwg.mxu0
    %127 = vst [vmem:[#allocation7] sm:$0x1] %v125
    %v128 = vxor.u32 %v125, 2147483648
    %v129 = vmul.f32 %v128, 1.442695
    %v130 = vpow.pop %v129
    %v131 = vadd.f32 %v130, 1.0
    %v132 = vrcp.pop %v131
    %v133 = vmul.f32 %v131, %v132
    %v134 = vsub.f32 1.0, %v133
    %v135 = vmul.f32 %v132, %v134
    %v136 = vadd.f32 %v132, %v135
    %vm137 = vweird.f32 %v131
    %vm138 = vweird.f32 %v132
    %vm139 = vmor %vm137, %vm138
    %v140 = vsel %vm139, %v132, %v136
    %v141 = vand.u32 2147483647, %v131
    %vm142 = vcmp.eq.f32.partialorder %v141, 8.507059e+37
    %v143 = vand.u32 %v131, 2147483648
    %v144 = vor.u32 1.1754944e-38, %v143
    %v145 = vsel %vm142, %v144, %v140
    %v146 = vmul.f32 1.0, %v145
    %147 = vst [vmem:[#allocation8] sm:$0x1] %v146
    // Predicated region
    $region22: #{tpu_custom_call.1} parent=1 // pred_check
      _
    $region23: #{tpu_custom_call.1} parent=1 // pred_check_branch
      %149 = sbr.rel (0) target = $region25
    $region24: #{tpu_custom_call.1} parent=1 // pred_region
      %151 = vsyncadd [#allocation4], 0
      %s153 = sshll.u32 [#allocation7], 4
      %s154 = int_to_ptr.vmem [resolvable:$true] %s153
      %s155 = sshll.u32 %s3, 4
      %s156 = int_to_ptr.hbm [resolvable:$true] %s155
      %158 = dma.vmem_to_hbm [thread:$0]  %s154, 16, %s156, [#allocation4]
    $region25: #{tpu_custom_call.1} parent=1 // pred_fallthru
      _
    // Predicated region
    $region26: #{tpu_custom_call.1} parent=1 // pred_check
      _
    $region27: #{tpu_custom_call.1} parent=1 // pred_check_branch
      %160 = sbr.rel (0) target = $region29
    $region28: #{tpu_custom_call.1} parent=1 // pred_region
      %162 = vsyncadd [#allocation9], 0
      %s164 = sshll.u32 [#allocation8], 4
      %s165 = int_to_ptr.vmem [resolvable:$true] %s164
      %s166 = sshll.u32 %s4, 4
      %s167 = int_to_ptr.hbm [resolvable:$true] %s166
      %169 = dma.vmem_to_hbm [thread:$0]  %s165, 16, %s167, [#allocation9]
    $region29: #{tpu_custom_call.1} parent=1 // pred_fallthru
      _
    // Predicated region
    $region30: #{tpu_custom_call.1} parent=1 // pred_check
      _
    $region31: #{tpu_custom_call.1} parent=1 // pred_check_branch
      %171 = sbr.rel (0) target = $region33
    $region32: #{tpu_custom_call.1} parent=1 // pred_region
      %173 = dma.done [#allocation4], 16
    $region33: #{tpu_custom_call.1} parent=1 // pred_fallthru
      _
    // Predicated region
    $region34: #{tpu_custom_call.1} parent=1 // pred_check
      _
    $region35: #{tpu_custom_call.1} parent=1 // pred_check_branch
      %175 = sbr.rel (0) target = $region37
    $region36: #{tpu_custom_call.1} parent=1 // pred_region
      %177 = dma.done [#allocation9], 16
    $region37: #{tpu_custom_call.1} parent=1 // pred_fallthru
      _
    %178 = vsyncpa [#allocation3], 1
    %179 = vsyncpa [#allocation6], 1
    %180 = vsyncpa [#allocation4], 1
    %181 = vsyncpa [#allocation9], 1

</llo_original>
